<compile_context>
chip_gen: v5e
topology: v5e:2x2
jax: 0.10.0
libtpu: 0.0.40
codegen_flags: <defaults>
</compile_context>

<pallas_src>
import jax
import jax.numpy as jnp
from jax import lax
from jax.experimental import pallas as pl
from jax.experimental.pallas import tpu as pltpu


def _round_up(x: int, k: int) -> int:
    return ((x + k - 1) // k) * k


def _rbf_basis_kernel(gamma_ref, os_ref, x_ref, x2_ref, c_ref, c2_ref, out_ref):
    """One grid step: k(X[i-tile], centers[j-tile]).

    gamma_ref: (1, 1)  SMEM  scalar -0.5 / lengthscale**2
    os_ref:    (1, 1)  SMEM  scalar outputscale
    x_ref:     (tn, d) VMEM  query-point tile
    x2_ref:    (tn, 1) VMEM  precomputed ||x||^2 for this row tile
    c_ref:     (tm, d) VMEM  centers tile
    c2_ref:    (1, tm) VMEM  precomputed ||centers||^2 for this column tile
    out_ref:   (tn, tm) VMEM output tile (lane-dense: tm % 128 == 0)
    """
    gamma = gamma_ref[0, 0]
    outscale = os_ref[0, 0]

    # ||x||^2 + ||c||^2 - 2 x.c ; contraction of the shared last dim goes
    # straight to the MXU (no transpose of the centers tile), the norms were
    # precomputed once in the wrapper.
    xc = lax.dot_general(x_ref[...], c_ref[...], (((1,), (1,)), ((), ())),
                         preferred_element_type=jnp.float32)           # (tn, tm)
    sq_dist = jnp.maximum(x2_ref[...] + c2_ref[...] - 2.0 * xc, 0.0)

    out_ref[...] = (outscale * jnp.exp(gamma * sq_dist)).astype(out_ref.dtype)


def kernel_basis_forward(X, centers, lengthscale, outputscale, *,
                         tn=512, tm=512, out_dtype=jnp.float32):
    """Evaluates k(X, centers) for ScaleKernel(RBFKernel) via a Pallas TPU kernel.

    X:       (n, d)
    centers: (m, d)
    returns: (n, m) array of `out_dtype` (float32 by default; pass bf16 to
             halve HBM writeback of this store-bound kernel if downstream
             consumers accept it — all distance math stays in f32 either way).
    """
    X = jnp.asarray(X, jnp.float32)
    centers = jnp.asarray(centers, jnp.float32)
    n, d = X.shape
    m, d2 = centers.shape
    assert d == d2, "X and centers must share the feature dimension"

    # Tile sizes: sublane-aligned rows, lane-dense (multiple-of-128) columns,
    # clamped to the (padded) problem size so small inputs use a single tile.
    tn = _round_up(min(int(tn), _round_up(n, 8)), 8)
    tm = _round_up(min(int(tm), _round_up(m, 128)), 128)

    n_pad = _round_up(n, tn)
    m_pad = _round_up(m, tm)
    if n_pad != n:
        X = jnp.pad(X, ((0, n_pad - n), (0, 0)))
    if m_pad != m:
        centers = jnp.pad(centers, ((0, m_pad - m), (0, 0)))

    # Norms hoisted out of the grid loop entirely (computed once, not once per
    # grid step); streamed in as tiny (tn,1)/(1,tm) blocks.
    x2 = jnp.sum(X * X, axis=-1, keepdims=True)                        # (n_pad, 1)
    c2 = jnp.sum(centers * centers, axis=-1)[None, :]                  # (1, m_pad)

    ls = jnp.float32(lengthscale)
    gamma = jnp.reshape(-0.5 / (ls * ls), (1, 1))
    os_ = jnp.reshape(jnp.float32(outputscale), (1, 1))

    grid = (n_pad // tn, m_pad // tm)
    out_itemsize = jnp.dtype(out_dtype).itemsize

    # Double-buffered tiles + headroom; clamped so it stays portable to v7x
    # (64 MiB physical VMEM).
    vmem_bytes = 2 * (4 * (tn * d + tn + tm * d + tm)
                      + out_itemsize * tn * tm)
    vmem_limit = int(min(max(vmem_bytes + (8 << 20), 32 << 20), 64 << 20))

    cost = pl.CostEstimate(
        flops=2 * n_pad * m_pad * d + 5 * n_pad * m_pad,
        transcendentals=n_pad * m_pad,
        bytes_accessed=4 * (n_pad * d + n_pad + m_pad * d + m_pad)
        + out_itemsize * n_pad * m_pad,
    )

    out = pl.pallas_call(
        _rbf_basis_kernel,
        out_shape=jax.ShapeDtypeStruct((n_pad, m_pad), out_dtype),
        grid_spec=pltpu.PrefetchScalarGridSpec(
            num_scalar_prefetch=0,
            grid=grid,
            in_specs=[
                pl.BlockSpec(memory_space=pltpu.MemorySpace.SMEM),     # gamma
                pl.BlockSpec(memory_space=pltpu.MemorySpace.SMEM),     # outputscale
                pl.BlockSpec((tn, d), lambda i, j: (i, 0)),            # X row tile
                pl.BlockSpec((tn, 1), lambda i, j: (i, 0)),            # ||x||^2 tile
                pl.BlockSpec((tm, d), lambda i, j: (j, 0)),            # centers tile
                pl.BlockSpec((1, tm), lambda i, j: (0, j)),            # ||c||^2 tile
            ],
            out_specs=pl.BlockSpec((tn, tm), lambda i, j: (i, j)),
        ),
        compiler_params=pltpu.CompilerParams(
            dimension_semantics=("parallel", "parallel"),
            vmem_limit_bytes=vmem_limit,
        ),
        cost_estimate=cost,
    )(gamma, os_, X, x2, centers, c2)

    return out[:n, :m]


def _reference(X, centers, lengthscale, outputscale):
    x = X / lengthscale
    c = centers / lengthscale
    sq = (jnp.sum(x * x, -1)[:, None] + jnp.sum(c * c, -1)[None, :]
          - 2.0 * x @ c.T)
    return outputscale * jnp.exp(-0.5 * jnp.maximum(sq, 0.0))


if __name__ == "__main__":
    key = jax.random.PRNGKey(0)
    kx, kc = jax.random.split(key)

    # Small but non-trivial shapes: exercises row clamping/padding (320) and
    # column padding to a lane-dense tile (192 -> 256).
    n, m, d = 320, 192, 8
    X = jax.random.normal(kx, (n, d), dtype=jnp.float32)
    centers = jax.random.normal(kc, (m, d), dtype=jnp.float32)

    # Deterministic "parameters" of the kernel (in place of a checkpoint).
    lengthscale = 0.75
    outputscale = 1.25

    out = kernel_basis_forward(X, centers, lengthscale, outputscale)
    out = jax.block_until_ready(out)

    ref = _reference(X, centers, lengthscale, outputscale)
    assert out.shape == (n, m)
    assert jnp.allclose(out, ref, atol=1e-5, rtol=1e-4), float(
        jnp.max(jnp.abs(out - ref)))

    print("KERNEL_OK")
</pallas_src>

<mosaic_0001>
module attributes {stable_mosaic.version = 11 : i64} {
  func.func @_rbf_basis_kernel(%arg0: i32, %arg1: i32, %arg2: memref<1x1xf32, #tpu.memory_space<smem>>, %arg3: memref<1x1xf32, #tpu.memory_space<smem>>, %arg4: memref<320x8xf32, #tpu.memory_space<vmem>>, %arg5: memref<320x1xf32, #tpu.memory_space<vmem>>, %arg6: memref<256x8xf32, #tpu.memory_space<vmem>>, %arg7: memref<1x256xf32, #tpu.memory_space<vmem>>, %arg8: memref<320x256xf32, #tpu.memory_space<vmem>>) attributes {dimension_semantics = [#tpu.dimension_semantics<parallel>, #tpu.dimension_semantics<parallel>], iteration_bounds = array<i64: 1, 1>, scalar_prefetch = 0 : i64, scratch_operands = 0 : i64, tpu.core_type = #tpu.core_type<tc>, window_params = [{transform_indices = @transform_0, window_bounds = array<i64: 1, 1>}, {transform_indices = @transform_1, window_bounds = array<i64: 1, 1>}, {transform_indices = @transform_2, window_bounds = array<i64: 320, 8>}, {transform_indices = @transform_3, window_bounds = array<i64: 320, 1>}, {transform_indices = @transform_4, window_bounds = array<i64: 256, 8>}, {transform_indices = @transform_5, window_bounds = array<i64: 1, 256>}, {transform_indices = @transform_6, window_bounds = array<i64: 320, 256>}]} {
    %c0 = arith.constant 0 : index
    %c0_0 = arith.constant 0 : index
    %0 = memref.load %arg2[%c0, %c0_0] : memref<1x1xf32, #tpu.memory_space<smem>>
    %c0_1 = arith.constant 0 : index
    %c0_2 = arith.constant 0 : index
    %1 = memref.load %arg3[%c0_1, %c0_2] : memref<1x1xf32, #tpu.memory_space<smem>>
    %c0_3 = arith.constant 0 : index
    %c0_4 = arith.constant 0 : index
    %2 = vector.load %arg4[%c0_3, %c0_4] : memref<320x8xf32, #tpu.memory_space<vmem>>, vector<320x8xf32>
    %c0_5 = arith.constant 0 : index
    %c0_6 = arith.constant 0 : index
    %3 = vector.load %arg6[%c0_5, %c0_6] : memref<256x8xf32, #tpu.memory_space<vmem>>, vector<256x8xf32>
    %cst = arith.constant dense<0.000000e+00> : vector<320x256xf32>
    %4 = tpu.matmul %2, %3, %cst {dimension_numbers = #tpu.dot_dimension_numbers<[1], [1], [0], [0], [0, 0, 1, 0], [], []>} : vector<320x8xf32>, vector<256x8xf32>, vector<320x256xf32> -> vector<320x256xf32>
    %c0_7 = arith.constant 0 : index
    %c0_8 = arith.constant 0 : index
    %5 = vector.load %arg5[%c0_7, %c0_8] : memref<320x1xf32, #tpu.memory_space<vmem>>, vector<320x1xf32>
    %c0_9 = arith.constant 0 : index
    %c0_10 = arith.constant 0 : index
    %6 = vector.load %arg7[%c0_9, %c0_10] : memref<1x256xf32, #tpu.memory_space<vmem>>, vector<1x256xf32>
    %7 = vector.broadcast %5 : vector<320x1xf32> to vector<320x256xf32>
    %8 = vector.broadcast %6 : vector<1x256xf32> to vector<320x256xf32>
    %9 = arith.addf %7, %8 : vector<320x256xf32>
    %cst_11 = arith.constant 2.000000e+00 : f32
    %10 = vector.broadcast %cst_11 : f32 to vector<320x256xf32>
    %11 = arith.mulf %10, %4 : vector<320x256xf32>
    %12 = arith.subf %9, %11 : vector<320x256xf32>
    %cst_12 = arith.constant 0.000000e+00 : f32
    %13 = vector.broadcast %cst_12 : f32 to vector<320x256xf32>
    %14 = arith.maximumf %12, %13 : vector<320x256xf32>
    %15 = vector.broadcast %0 : f32 to vector<320x256xf32>
    %16 = arith.mulf %15, %14 : vector<320x256xf32>
    %17 = math.exp %16 : vector<320x256xf32>
    %18 = vector.broadcast %1 : f32 to vector<320x256xf32>
    %19 = arith.mulf %18, %17 : vector<320x256xf32>
    %c0_13 = arith.constant 0 : index
    %c0_14 = arith.constant 0 : index
    %20 = vector.load %arg8[%c0_13, %c0_14] : memref<320x256xf32, #tpu.memory_space<vmem>>, vector<320x256xf32>
    tpu.vector_store %arg8[%c0_13, %c0_14], %19 {strides = array<i32>} : memref<320x256xf32, #tpu.memory_space<vmem>>, vector<320x256xf32>,
    return
  }
  func.func @transform_0(%arg0: i32, %arg1: i32) -> (i32, i32) {
    %c0_i32 = arith.constant 0 : i32
    %c0_i32_0 = arith.constant 0 : i32
    %c0_i32_1 = arith.constant 0 : i32
    return %c0_i32, %c0_i32_0 : i32, i32
  }
  func.func @transform_1(%arg0: i32, %arg1: i32) -> (i32, i32) {
    %c0_i32 = arith.constant 0 : i32
    %c0_i32_0 = arith.constant 0 : i32
    %c0_i32_1 = arith.constant 0 : i32
    return %c0_i32, %c0_i32_0 : i32, i32
  }
  func.func @transform_2(%arg0: i32, %arg1: i32) -> (i32, i32) {
    %c0_i32 = arith.constant 0 : i32
    %c0_i32_0 = arith.constant 0 : i32
    return %arg0, %c0_i32 : i32, i32
  }
  func.func @transform_3(%arg0: i32, %arg1: i32) -> (i32, i32) {
    %c0_i32 = arith.constant 0 : i32
    %c0_i32_0 = arith.constant 0 : i32
    return %arg0, %c0_i32 : i32, i32
  }
  func.func @transform_4(%arg0: i32, %arg1: i32) -> (i32, i32) {
    %c0_i32 = arith.constant 0 : i32
    %c0_i32_0 = arith.constant 0 : i32
    return %arg1, %c0_i32 : i32, i32
  }
  func.func @transform_5(%arg0: i32, %arg1: i32) -> (i32, i32) {
    %c0_i32 = arith.constant 0 : i32
    %c0_i32_0 = arith.constant 0 : i32
    return %c0_i32, %arg1 : i32, i32
  }
  func.func @transform_6(%arg0: i32, %arg1: i32) -> (i32, i32) {
    %c0_i32 = arith.constant 0 : i32
    return %arg0, %arg1 : i32, i32
  }
}

</mosaic_0001>

<llo_original>
// kernel: tpu_custom_call.1
$region0: #{tpu_custom_call.1}
  #allocation0 [shape = 'u32[]', space=smem, size = 0x4, offset = 0x4, fixed_abs, tag = 'smem constant byte address 0x4 - core index']
  #allocation1 [shape = 'u32[72,128]{1,0:T(1,128)}', space=vmem, size = 0x9000, scoped, tag = 'internal scratch']
  #allocation2 [shape = 'f32[1,1]{1,0:T(1,128)S(6)}', space=smem, size = 0x200, scoped, tag = 'scoped memory for tpu_custom_call.1']
  #allocation3 [shape = 'f32[1,1]{1,0:T(1,128)S(6)}', space=smem, size = 0x200, scoped, tag = 'scoped memory for tpu_custom_call.1']
  %s0 = inlined_call_operand.<no memory space> [shape: f32[1,1], index: 0, kind: input, shape index: {}]
  %s1 = inlined_call_operand.<no memory space> [shape: f32[1,1], index: 1, kind: input, shape index: {}]
  %s2 = inlined_call_operand.vmem [shape: f32[320,8], index: 2, kind: input, shape index: {}]
  %s3 = inlined_call_operand.vmem [shape: f32[320,1], index: 3, kind: input, shape index: {}]
  %s4 = inlined_call_operand.vmem [shape: f32[256,8], index: 4, kind: input, shape index: {}]
  %s5 = inlined_call_operand.vmem [shape: f32[1,256], index: 5, kind: input, shape index: {}]
  %s6 = inlined_call_operand.hbm [shape: f32[320,256], index: 6, kind: output, shape index: {}]
  %s7 = sld [smem:[#allocation0]]
  $region34: #{tpu_custom_call.1} parent=0
    _
  %s9 = ssub.s32 1, %s7
  %s10 = scalar_select 0, %s9, %s7
  %11 = sst [smem:[#allocation2]] %s0
  %12 = sst [smem:[#allocation3]] %s1
  $region1: #{tpu_custom_call.1} parent=0
    #allocation4 [shape = 'u8[327680]{0}', space=vmem, size = 0x50000, scoped, tag = 'output window, operand 0, single buffered']
    #allocation5 [shape = 's32[1]{0}', space=sflag, size = 0x4, scoped, tag = 'scoped memory for tpu_custom_call.1']
    %13 = vsyncpa [#allocation5], 0
    // Predicated region
    $region2: #{tpu_custom_call.1} parent=1 // pred_check
      _
    $region3: #{tpu_custom_call.1} parent=1 // pred_check_branch
      %15 = sbr.rel (0) target = $region5
    $region4: #{tpu_custom_call.1} parent=1 // pred_region
      _
    $region5: #{tpu_custom_call.1} parent=1 // pred_fallthru
      _
    // Predicated region
    $region6: #{tpu_custom_call.1} parent=1 // pred_check
      _
    $region7: #{tpu_custom_call.1} parent=1 // pred_check_branch
      %17 = sbr.rel (0) target = $region9
    $region8: #{tpu_custom_call.1} parent=1 // pred_region
      _
    $region9: #{tpu_custom_call.1} parent=1 // pred_fallthru
      _
    // Predicated region
    $region10: #{tpu_custom_call.1} parent=1 // pred_check
      _
    $region11: #{tpu_custom_call.1} parent=1 // pred_check_branch
      %19 = sbr.rel (0) target = $region13
    $region12: #{tpu_custom_call.1} parent=1 // pred_region
      _
    $region13: #{tpu_custom_call.1} parent=1 // pred_fallthru
      _
    // Predicated region
    $region14: #{tpu_custom_call.1} parent=1 // pred_check
      _
    $region15: #{tpu_custom_call.1} parent=1 // pred_check_branch
      %21 = sbr.rel (0) target = $region17
    $region16: #{tpu_custom_call.1} parent=1 // pred_region
      _
    $region17: #{tpu_custom_call.1} parent=1 // pred_fallthru
      _
    // Predicated region
    $region18: #{tpu_custom_call.1} parent=1 // pred_check
      _
    $region19: #{tpu_custom_call.1} parent=1 // pred_check_branch
      %23 = sbr.rel (0) target = $region21
    $region20: #{tpu_custom_call.1} parent=1 // pred_region
      _
    $region21: #{tpu_custom_call.1} parent=1 // pred_fallthru
      _
    // Predicated region
    $region22: #{tpu_custom_call.1} parent=1 // pred_check
      _
    $region23: #{tpu_custom_call.1} parent=1 // pred_check_branch
      %25 = sbr.rel (0) target = $region25
    $region24: #{tpu_custom_call.1} parent=1 // pred_region
      _
    $region25: #{tpu_custom_call.1} parent=1 // pred_fallthru
      _
    %s26 = sld [smem:[#allocation2]]
    %s27 = sld [smem:[#allocation3]]
    %v28 = vld [vmem:[%s2] sm:$0xff]
    %v29 = vld [vmem:[%s2 + $0x8] sm:$0xff]
    %v30 = vld [vmem:[%s2 + $0x10] sm:$0xff]
    %v31 = vld [vmem:[%s2 + $0x18] sm:$0xff]
    %v32 = vld [vmem:[%s2 + $0x20] sm:$0xff]
    %v33 = vld [vmem:[%s2 + $0x28] sm:$0xff]
    %v34 = vld [vmem:[%s2 + $0x30] sm:$0xff]
    %v35 = vld [vmem:[%s2 + $0x38] sm:$0xff]
    %v36 = vld [vmem:[%s2 + $0x40] sm:$0xff]
    %v37 = vld [vmem:[%s2 + $0x48] sm:$0xff]
    %v38 = vld [vmem:[%s2 + $0x50] sm:$0xff]
    %v39 = vld [vmem:[%s2 + $0x58] sm:$0xff]
    %v40 = vld [vmem:[%s2 + $0x60] sm:$0xff]
    %v41 = vld [vmem:[%s2 + $0x68] sm:$0xff]
    %v42 = vld [vmem:[%s2 + $0x70] sm:$0xff]
    %v43 = vld [vmem:[%s2 + $0x78] sm:$0xff]
    %v44 = vld [vmem:[%s2 + $0x80] sm:$0xff]
    %v45 = vld [vmem:[%s2 + $0x88] sm:$0xff]
    %v46 = vld [vmem:[%s2 + $0x90] sm:$0xff]
    %v47 = vld [vmem:[%s2 + $0x98] sm:$0xff]
    %v48 = vld [vmem:[%s2 + $0xa0] sm:$0xff]
    %v49 = vld [vmem:[%s2 + $0xa8] sm:$0xff]
    %v50 = vld [vmem:[%s2 + $0xb0] sm:$0xff]
    %v51 = vld [vmem:[%s2 + $0xb8] sm:$0xff]
    %v52 = vld [vmem:[%s2 + $0xc0] sm:$0xff]
    %v53 = vld [vmem:[%s2 + $0xc8] sm:$0xff]
    %v54 = vld [vmem:[%s2 + $0xd0] sm:$0xff]
    %v55 = vld [vmem:[%s2 + $0xd8] sm:$0xff]
    %v56 = vld [vmem:[%s2 + $0xe0] sm:$0xff]
    %v57 = vld [vmem:[%s2 + $0xe8] sm:$0xff]
    %v58 = vld [vmem:[%s2 + $0xf0] sm:$0xff]
    %v59 = vld [vmem:[%s2 + $0xf8] sm:$0xff]
    %v60 = vld [vmem:[%s2 + $0x100] sm:$0xff]
    %v61 = vld [vmem:[%s2 + $0x108] sm:$0xff]
    %v62 = vld [vmem:[%s2 + $0x110] sm:$0xff]
    %v63 = vld [vmem:[%s2 + $0x118] sm:$0xff]
    %v64 = vld [vmem:[%s2 + $0x120] sm:$0xff]
    %v65 = vld [vmem:[%s2 + $0x128] sm:$0xff]
    %v66 = vld [vmem:[%s2 + $0x130] sm:$0xff]
    %v67 = vld [vmem:[%s2 + $0x138] sm:$0xff]
    %v68 = vld [vmem:[%s4] sm:$0xff]
    %v69 = vld [vmem:[%s4 + $0x8] sm:$0xff]
    %v70 = vld [vmem:[%s4 + $0x10] sm:$0xff]
    %v71 = vld [vmem:[%s4 + $0x18] sm:$0xff]
    %v72 = vld [vmem:[%s4 + $0x20] sm:$0xff]
    %v73 = vld [vmem:[%s4 + $0x28] sm:$0xff]
    %v74 = vld [vmem:[%s4 + $0x30] sm:$0xff]
    %v75 = vld [vmem:[%s4 + $0x38] sm:$0xff]
    %v76 = vld [vmem:[%s4 + $0x40] sm:$0xff]
    %v77 = vld [vmem:[%s4 + $0x48] sm:$0xff]
    %v78 = vld [vmem:[%s4 + $0x50] sm:$0xff]
    %v79 = vld [vmem:[%s4 + $0x58] sm:$0xff]
    %v80 = vld [vmem:[%s4 + $0x60] sm:$0xff]
    %v81 = vld [vmem:[%s4 + $0x68] sm:$0xff]
    %v82 = vld [vmem:[%s4 + $0x70] sm:$0xff]
    %v83 = vld [vmem:[%s4 + $0x78] sm:$0xff]
    %v84 = vld [vmem:[%s4 + $0x80] sm:$0xff]
    %v85 = vld [vmem:[%s4 + $0x88] sm:$0xff]
    %v86 = vld [vmem:[%s4 + $0x90] sm:$0xff]
    %v87 = vld [vmem:[%s4 + $0x98] sm:$0xff]
    %v88 = vld [vmem:[%s4 + $0xa0] sm:$0xff]
    %v89 = vld [vmem:[%s4 + $0xa8] sm:$0xff]
    %v90 = vld [vmem:[%s4 + $0xb0] sm:$0xff]
    %v91 = vld [vmem:[%s4 + $0xb8] sm:$0xff]
    %v92 = vld [vmem:[%s4 + $0xc0] sm:$0xff]
    %v93 = vld [vmem:[%s4 + $0xc8] sm:$0xff]
    %v94 = vld [vmem:[%s4 + $0xd0] sm:$0xff]
    %v95 = vld [vmem:[%s4 + $0xd8] sm:$0xff]
    %v96 = vld [vmem:[%s4 + $0xe0] sm:$0xff]
    %v97 = vld [vmem:[%s4 + $0xe8] sm:$0xff]
    %v98 = vld [vmem:[%s4 + $0xf0] sm:$0xff]
    %v99 = vld [vmem:[%s4 + $0xf8] sm:$0xff]
    %vm100 = vcmask 64512
    %v102 = vsel %vm100, %v28, 0
    %v105 = vsel %vm100, %v29, 0
    %v108 = vsel %vm100, %v30, 0
    %v111 = vsel %vm100, %v31, 0
    %v114 = vsel %vm100, %v32, 0
    %v117 = vsel %vm100, %v33, 0
    %v120 = vsel %vm100, %v34, 0
    %v123 = vsel %vm100, %v35, 0
    %v126 = vsel %vm100, %v36, 0
    %v129 = vsel %vm100, %v37, 0
    %v132 = vsel %vm100, %v38, 0
    %v135 = vsel %vm100, %v39, 0
    %v138 = vsel %vm100, %v40, 0
    %v141 = vsel %vm100, %v41, 0
    %v144 = vsel %vm100, %v42, 0
    %v147 = vsel %vm100, %v43, 0
    %v150 = vsel %vm100, %v44, 0
    %v153 = vsel %vm100, %v45, 0
    %v156 = vsel %vm100, %v46, 0
    %v159 = vsel %vm100, %v47, 0
    %v162 = vsel %vm100, %v48, 0
    %v165 = vsel %vm100, %v49, 0
    %v168 = vsel %vm100, %v50, 0
    %v171 = vsel %vm100, %v51, 0
    %v174 = vsel %vm100, %v52, 0
    %v177 = vsel %vm100, %v53, 0
    %v180 = vsel %vm100, %v54, 0
    %v183 = vsel %vm100, %v55, 0
    %v186 = vsel %vm100, %v56, 0
    %v189 = vsel %vm100, %v57, 0
    %v192 = vsel %vm100, %v58, 0
    %v195 = vsel %vm100, %v59, 0
    %v198 = vsel %vm100, %v60, 0
    %v201 = vsel %vm100, %v61, 0
    %v204 = vsel %vm100, %v62, 0
    %v207 = vsel %vm100, %v63, 0
    %v210 = vsel %vm100, %v64, 0
    %v213 = vsel %vm100, %v65, 0
    %v216 = vsel %vm100, %v66, 0
    %v219 = vsel %vm100, %v67, 0
    %v222 = vsel %vm100, %v68, 0
    %v225 = vsel %vm100, %v69, 0
    %v228 = vsel %vm100, %v70, 0
    %v231 = vsel %vm100, %v71, 0
    %v234 = vsel %vm100, %v72, 0
    %v237 = vsel %vm100, %v73, 0
    %v240 = vsel %vm100, %v74, 0
    %v243 = vsel %vm100, %v75, 0
    %v246 = vsel %vm100, %v76, 0
    %v249 = vsel %vm100, %v77, 0
    %v252 = vsel %vm100, %v78, 0
    %v255 = vsel %vm100, %v79, 0
    %v258 = vsel %vm100, %v80, 0
    %v261 = vsel %vm100, %v81, 0
    %v264 = vsel %vm100, %v82, 0
    %v267 = vsel %vm100, %v83, 0
    %v270 = vsel %vm100, %v84, 0
    %v273 = vsel %vm100, %v85, 0
    %v276 = vsel %vm100, %v86, 0
    %v279 = vsel %vm100, %v87, 0
    %v282 = vsel %vm100, %v88, 0
    %v285 = vsel %vm100, %v89, 0
    %v288 = vsel %vm100, %v90, 0
    %v291 = vsel %vm100, %v91, 0
    %v294 = vsel %vm100, %v92, 0
    %v297 = vsel %vm100, %v93, 0
    %v300 = vsel %vm100, %v94, 0
    %v303 = vsel %vm100, %v95, 0
    %v306 = vsel %vm100, %v96, 0
    %v309 = vsel %vm100, %v97, 0
    %v312 = vsel %vm100, %v98, 0
    %v315 = vsel %vm100, %v99, 0
    %317 = vmatpush.xpose.msra.mxu0 %v267
    %318 = vmatpush.xpose.msra.mxu0 %v264
    %319 = vmatpush.xpose.msra.mxu0 %v261
    %320 = vmatpush.xpose.msra.mxu0 %v258
    %321 = vmatpush.xpose.msra.mxu0 %v255
    %322 = vmatpush.xpose.msra.mxu0 %v252
    %323 = vmatpush.xpose.msra.mxu0 %v249
    %324 = vmatpush.xpose.msra.mxu0 %v246
    %325 = vmatpush.xpose.msra.mxu0 %v243
    %326 = vmatpush.xpose.msra.mxu0 %v240
    %327 = vmatpush.xpose.msra.mxu0 %v237
    %328 = vmatpush.xpose.msra.mxu0 %v234
    %329 = vmatpush.xpose.msra.mxu0 %v231
    %330 = vmatpush.xpose.msra.mxu0 %v228
    %331 = vmatpush.xpose.msra.mxu0 %v225
    %332 = vmatpush.xpose.msra.mxu0 %v222
    %333 = vmatmul.f32.gmra.mxu0 %v102
    %v334 = vpop.f32.mrf.mxu0
    %v335 = vadd.f32 0.0, %v334
    %336 = vmatmul.f32.gmra.mxu0 %v105
    %v337 = vpop.f32.mrf.mxu0
    %v338 = vadd.f32 0.0, %v337
    %339 = vmatmul.f32.gmra.mxu0 %v108
    %v340 = vpop.f32.mrf.mxu0
    %v341 = vadd.f32 0.0, %v340
    %342 = vmatmul.f32.gmra.mxu0 %v111
    %v343 = vpop.f32.mrf.mxu0
    %v344 = vadd.f32 0.0, %v343
    %345 = vmatmul.f32.gmra.mxu0 %v114
    %v346 = vpop.f32.mrf.mxu0
    %v347 = vadd.f32 0.0, %v346
    %348 = vmatmul.f32.gmra.mxu0 %v117
    %v349 = vpop.f32.mrf.mxu0
    %v350 = vadd.f32 0.0, %v349
    %351 = vmatmul.f32.gmra.mxu0 %v120
    %v352 = vpop.f32.mrf.mxu0
    %v353 = vadd.f32 0.0, %v352
    %354 = vmatmul.f32.gmra.mxu0 %v123
    %v355 = vpop.f32.mrf.mxu0
    %v356 = vadd.f32 0.0, %v355
    %357 = vmatmul.f32.gmra.mxu0 %v126
    %v358 = vpop.f32.mrf.mxu0
    %v359 = vadd.f32 0.0, %v358
    %360 = vmatmul.f32.gmra.mxu0 %v129
    %v361 = vpop.f32.mrf.mxu0
    %v362 = vadd.f32 0.0, %v361
    %363 = vmatmul.f32.gmra.mxu0 %v132
    %v364 = vpop.f32.mrf.mxu0
    %v365 = vadd.f32 0.0, %v364
    %366 = vmatmul.f32.gmra.mxu0 %v135
    %v367 = vpop.f32.mrf.mxu0
    %v368 = vadd.f32 0.0, %v367
    %369 = vmatmul.f32.gmra.mxu0 %v138
    %v370 = vpop.f32.mrf.mxu0
    %v371 = vadd.f32 0.0, %v370
    %372 = vmatmul.f32.gmra.mxu0 %v141
    %v373 = vpop.f32.mrf.mxu0
    %v374 = vadd.f32 0.0, %v373
    %375 = vmatmul.f32.gmra.mxu0 %v144
    %v376 = vpop.f32.mrf.mxu0
    %v377 = vadd.f32 0.0, %v376
    %378 = vmatmul.f32.gmra.mxu0 %v147
    %v379 = vpop.f32.mrf.mxu0
    %v380 = vadd.f32 0.0, %v379
    %381 = vmatmul.f32.gmra.mxu0 %v150
    %v382 = vpop.f32.mrf.mxu0
    %v383 = vadd.f32 0.0, %v382
    %384 = vmatmul.f32.gmra.mxu0 %v153
    %v385 = vpop.f32.mrf.mxu0
    %v386 = vadd.f32 0.0, %v385
    %387 = vmatmul.f32.gmra.mxu0 %v156
    %v388 = vpop.f32.mrf.mxu0
    %v389 = vadd.f32 0.0, %v388
    %390 = vmatmul.f32.gmra.mxu0 %v159
    %v391 = vpop.f32.mrf.mxu0
    %v392 = vadd.f32 0.0, %v391
    %393 = vmatmul.f32.gmra.mxu0 %v162
    %v394 = vpop.f32.mrf.mxu0
    %v395 = vadd.f32 0.0, %v394
    %396 = vmatmul.f32.gmra.mxu0 %v165
    %v397 = vpop.f32.mrf.mxu0
    %v398 = vadd.f32 0.0, %v397
    %399 = vmatmul.f32.gmra.mxu0 %v168
    %v400 = vpop.f32.mrf.mxu0
    %v401 = vadd.f32 0.0, %v400
    %402 = vmatmul.f32.gmra.mxu0 %v171
    %v403 = vpop.f32.mrf.mxu0
    %v404 = vadd.f32 0.0, %v403
    %405 = vmatmul.f32.gmra.mxu0 %v174
    %v406 = vpop.f32.mrf.mxu0
    %v407 = vadd.f32 0.0, %v406
    %408 = vmatmul.f32.gmra.mxu0 %v177
    %v409 = vpop.f32.mrf.mxu0
    %v410 = vadd.f32 0.0, %v409
    %411 = vmatmul.f32.gmra.mxu0 %v180
    %v412 = vpop.f32.mrf.mxu0
    %v413 = vadd.f32 0.0, %v412
    %414 = vmatmul.f32.gmra.mxu0 %v183
    %v415 = vpop.f32.mrf.mxu0
    %v416 = vadd.f32 0.0, %v415
    %417 = vmatmul.f32.gmra.mxu0 %v186
    %v418 = vpop.f32.mrf.mxu0
    %v419 = vadd.f32 0.0, %v418
    %420 = vmatmul.f32.gmra.mxu0 %v189
    %v421 = vpop.f32.mrf.mxu0
    %v422 = vadd.f32 0.0, %v421
    %423 = vmatmul.f32.gmra.mxu0 %v192
    %v424 = vpop.f32.mrf.mxu0
    %v425 = vadd.f32 0.0, %v424
    %426 = vmatmul.f32.gmra.mxu0 %v195
    %v427 = vpop.f32.mrf.mxu0
    %v428 = vadd.f32 0.0, %v427
    %429 = vmatmul.f32.gmra.mxu0 %v198
    %v430 = vpop.f32.mrf.mxu0
    %v431 = vadd.f32 0.0, %v430
    %432 = vmatmul.f32.gmra.mxu0 %v201
    %v433 = vpop.f32.mrf.mxu0
    %v434 = vadd.f32 0.0, %v433
    %435 = vmatmul.f32.gmra.mxu0 %v204
    %v436 = vpop.f32.mrf.mxu0
    %v437 = vadd.f32 0.0, %v436
    %438 = vmatmul.f32.gmra.mxu0 %v207
    %v439 = vpop.f32.mrf.mxu0
    %v440 = vadd.f32 0.0, %v439
    %441 = vmatmul.f32.gmra.mxu0 %v210
    %v442 = vpop.f32.mrf.mxu0
    %v443 = vadd.f32 0.0, %v442
    %444 = vmatmul.f32.gmra.mxu0 %v213
    %v445 = vpop.f32.mrf.mxu0
    %v446 = vadd.f32 0.0, %v445
    %447 = vmatmul.f32.gmra.mxu0 %v216
    %v448 = vpop.f32.mrf.mxu0
    %v449 = vadd.f32 0.0, %v448
    %450 = vmatmul.f32.gmra.mxu0 %v219
    %v451 = vpop.f32.mrf.mxu0
    %v452 = vadd.f32 0.0, %v451
    %453 = vdwg.mxu0
    %454 = vmatpush.xpose.msra.mxu0 %v315
    %455 = vmatpush.xpose.msra.mxu0 %v312
    %456 = vmatpush.xpose.msra.mxu0 %v309
    %457 = vmatpush.xpose.msra.mxu0 %v306
    %458 = vmatpush.xpose.msra.mxu0 %v303
    %459 = vmatpush.xpose.msra.mxu0 %v300
    %460 = vmatpush.xpose.msra.mxu0 %v297
    %461 = vmatpush.xpose.msra.mxu0 %v294
    %462 = vmatpush.xpose.msra.mxu0 %v291
    %463 = vmatpush.xpose.msra.mxu0 %v288
    %464 = vmatpush.xpose.msra.mxu0 %v285
    %465 = vmatpush.xpose.msra.mxu0 %v282
    %466 = vmatpush.xpose.msra.mxu0 %v279
    %467 = vmatpush.xpose.msra.mxu0 %v276
    %468 = vmatpush.xpose.msra.mxu0 %v273
    %469 = vmatpush.xpose.msra.mxu0 %v270
    %470 = vmatmul.f32.gmra.mxu0 %v102
    %v471 = vpop.f32.mrf.mxu0
    %v472 = vadd.f32 0.0, %v471
    %473 = vmatmul.f32.gmra.mxu0 %v105
    %v474 = vpop.f32.mrf.mxu0
    %v475 = vadd.f32 0.0, %v474
    %476 = vmatmul.f32.gmra.mxu0 %v108
    %v477 = vpop.f32.mrf.mxu0
    %v478 = vadd.f32 0.0, %v477
    %479 = vmatmul.f32.gmra.mxu0 %v111
    %v480 = vpop.f32.mrf.mxu0
    %v481 = vadd.f32 0.0, %v480
    %482 = vmatmul.f32.gmra.mxu0 %v114
    %v483 = vpop.f32.mrf.mxu0
    %v484 = vadd.f32 0.0, %v483
    %485 = vmatmul.f32.gmra.mxu0 %v117
    %v486 = vpop.f32.mrf.mxu0
    %v487 = vadd.f32 0.0, %v486
    %488 = vmatmul.f32.gmra.mxu0 %v120
    %v489 = vpop.f32.mrf.mxu0
    %v490 = vadd.f32 0.0, %v489
    %491 = vmatmul.f32.gmra.mxu0 %v123
    %v492 = vpop.f32.mrf.mxu0
    %v493 = vadd.f32 0.0, %v492
    %494 = vmatmul.f32.gmra.mxu0 %v126
    %v495 = vpop.f32.mrf.mxu0
    %v496 = vadd.f32 0.0, %v495
    %497 = vmatmul.f32.gmra.mxu0 %v129
    %v498 = vpop.f32.mrf.mxu0
    %v499 = vadd.f32 0.0, %v498
    %500 = vmatmul.f32.gmra.mxu0 %v132
    %v501 = vpop.f32.mrf.mxu0
    %v502 = vadd.f32 0.0, %v501
    %503 = vmatmul.f32.gmra.mxu0 %v135
    %v504 = vpop.f32.mrf.mxu0
    %v505 = vadd.f32 0.0, %v504
    %506 = vmatmul.f32.gmra.mxu0 %v138
    %v507 = vpop.f32.mrf.mxu0
    %v508 = vadd.f32 0.0, %v507
    %509 = vmatmul.f32.gmra.mxu0 %v141
    %v510 = vpop.f32.mrf.mxu0
    %v511 = vadd.f32 0.0, %v510
    %512 = vmatmul.f32.gmra.mxu0 %v144
    %v513 = vpop.f32.mrf.mxu0
    %v514 = vadd.f32 0.0, %v513
    %515 = vmatmul.f32.gmra.mxu0 %v147
    %v516 = vpop.f32.mrf.mxu0
    %v517 = vadd.f32 0.0, %v516
    %518 = vmatmul.f32.gmra.mxu0 %v150
    %v519 = vpop.f32.mrf.mxu0
    %v520 = vadd.f32 0.0, %v519
    %521 = vmatmul.f32.gmra.mxu0 %v153
    %v522 = vpop.f32.mrf.mxu0
    %v523 = vadd.f32 0.0, %v522
    %524 = vmatmul.f32.gmra.mxu0 %v156
    %v525 = vpop.f32.mrf.mxu0
    %v526 = vadd.f32 0.0, %v525
    %527 = vmatmul.f32.gmra.mxu0 %v159
    %v528 = vpop.f32.mrf.mxu0
    %v529 = vadd.f32 0.0, %v528
    %530 = vmatmul.f32.gmra.mxu0 %v162
    %v531 = vpop.f32.mrf.mxu0
    %v532 = vadd.f32 0.0, %v531
    %533 = vmatmul.f32.gmra.mxu0 %v165
    %v534 = vpop.f32.mrf.mxu0
    %v535 = vadd.f32 0.0, %v534
    %536 = vmatmul.f32.gmra.mxu0 %v168
    %v537 = vpop.f32.mrf.mxu0
    %v538 = vadd.f32 0.0, %v537
    %539 = vmatmul.f32.gmra.mxu0 %v171
    %v540 = vpop.f32.mrf.mxu0
    %v541 = vadd.f32 0.0, %v540
    %542 = vmatmul.f32.gmra.mxu0 %v174
    %v543 = vpop.f32.mrf.mxu0
    %v544 = vadd.f32 0.0, %v543
    %545 = vmatmul.f32.gmra.mxu0 %v177
    %v546 = vpop.f32.mrf.mxu0
    %v547 = vadd.f32 0.0, %v546
    %548 = vmatmul.f32.gmra.mxu0 %v180
    %v549 = vpop.f32.mrf.mxu0
    %v550 = vadd.f32 0.0, %v549
    %551 = vmatmul.f32.gmra.mxu0 %v183
    %v552 = vpop.f32.mrf.mxu0
    %v553 = vadd.f32 0.0, %v552
    %554 = vmatmul.f32.gmra.mxu0 %v186
    %v555 = vpop.f32.mrf.mxu0
    %v556 = vadd.f32 0.0, %v555
    %557 = vmatmul.f32.gmra.mxu0 %v189
    %v558 = vpop.f32.mrf.mxu0
    %v559 = vadd.f32 0.0, %v558
    %560 = vmatmul.f32.gmra.mxu0 %v192
    %v561 = vpop.f32.mrf.mxu0
    %v562 = vadd.f32 0.0, %v561
    %563 = vmatmul.f32.gmra.mxu0 %v195
    %v564 = vpop.f32.mrf.mxu0
    %v565 = vadd.f32 0.0, %v564
    %566 = vmatmul.f32.gmra.mxu0 %v198
    %v567 = vpop.f32.mrf.mxu0
    %v568 = vadd.f32 0.0, %v567
    %569 = vmatmul.f32.gmra.mxu0 %v201
    %v570 = vpop.f32.mrf.mxu0
    %v571 = vadd.f32 0.0, %v570
    %572 = vmatmul.f32.gmra.mxu0 %v204
    %v573 = vpop.f32.mrf.mxu0
    %v574 = vadd.f32 0.0, %v573
    %575 = vmatmul.f32.gmra.mxu0 %v207
    %v576 = vpop.f32.mrf.mxu0
    %v577 = vadd.f32 0.0, %v576
    %578 = vmatmul.f32.gmra.mxu0 %v210
    %v579 = vpop.f32.mrf.mxu0
    %v580 = vadd.f32 0.0, %v579
    %581 = vmatmul.f32.gmra.mxu0 %v213
    %v582 = vpop.f32.mrf.mxu0
    %v583 = vadd.f32 0.0, %v582
    %584 = vmatmul.f32.gmra.mxu0 %v216
    %v585 = vpop.f32.mrf.mxu0
    %v586 = vadd.f32 0.0, %v585
    %587 = vmatmul.f32.gmra.mxu0 %v219
    %v588 = vpop.f32.mrf.mxu0
    %v589 = vadd.f32 0.0, %v588
    %590 = vdwg.mxu0
    %v591 = vld [vmem:[%s3] sm:$0xff]
    %v592 = vld [vmem:[%s3 + $0x8] sm:$0xff]
    %v593 = vld [vmem:[%s3 + $0x10] sm:$0xff]
    %v594 = vld [vmem:[%s3 + $0x18] sm:$0xff]
    %v595 = vld [vmem:[%s3 + $0x20] sm:$0xff]
    %v596 = vld [vmem:[%s3 + $0x28] sm:$0xff]
    %v597 = vld [vmem:[%s3 + $0x30] sm:$0xff]
    %v598 = vld [vmem:[%s3 + $0x38] sm:$0xff]
    %v599 = vld [vmem:[%s3 + $0x40] sm:$0xff]
    %v600 = vld [vmem:[%s3 + $0x48] sm:$0xff]
    %v601 = vld [vmem:[%s3 + $0x50] sm:$0xff]
    %v602 = vld [vmem:[%s3 + $0x58] sm:$0xff]
    %v603 = vld [vmem:[%s3 + $0x60] sm:$0xff]
    %v604 = vld [vmem:[%s3 + $0x68] sm:$0xff]
    %v605 = vld [vmem:[%s3 + $0x70] sm:$0xff]
    %v606 = vld [vmem:[%s3 + $0x78] sm:$0xff]
    %v607 = vld [vmem:[%s3 + $0x80] sm:$0xff]
    %v608 = vld [vmem:[%s3 + $0x88] sm:$0xff]
    %v609 = vld [vmem:[%s3 + $0x90] sm:$0xff]
    %v610 = vld [vmem:[%s3 + $0x98] sm:$0xff]
    %v611 = vld [vmem:[%s3 + $0xa0] sm:$0xff]
    %v612 = vld [vmem:[%s3 + $0xa8] sm:$0xff]
    %v613 = vld [vmem:[%s3 + $0xb0] sm:$0xff]
    %v614 = vld [vmem:[%s3 + $0xb8] sm:$0xff]
    %v615 = vld [vmem:[%s3 + $0xc0] sm:$0xff]
    %v616 = vld [vmem:[%s3 + $0xc8] sm:$0xff]
    %v617 = vld [vmem:[%s3 + $0xd0] sm:$0xff]
    %v618 = vld [vmem:[%s3 + $0xd8] sm:$0xff]
    %v619 = vld [vmem:[%s3 + $0xe0] sm:$0xff]
    %v620 = vld [vmem:[%s3 + $0xe8] sm:$0xff]
    %v621 = vld [vmem:[%s3 + $0xf0] sm:$0xff]
    %v622 = vld [vmem:[%s3 + $0xf8] sm:$0xff]
    %v623 = vld [vmem:[%s3 + $0x100] sm:$0xff]
    %v624 = vld [vmem:[%s3 + $0x108] sm:$0xff]
    %v625 = vld [vmem:[%s3 + $0x110] sm:$0xff]
    %v626 = vld [vmem:[%s3 + $0x118] sm:$0xff]
    %v627 = vld [vmem:[%s3 + $0x120] sm:$0xff]
    %v628 = vld [vmem:[%s3 + $0x128] sm:$0xff]
    %v629 = vld [vmem:[%s3 + $0x130] sm:$0xff]
    %v630 = vld [vmem:[%s3 + $0x138] sm:$0xff]
    %v631 = vld [vmem:[%s5] sm:$0x3]
    %633 = vset.pattern.permute.xlu0 0
    %634 = vperm.xlu0 %633, %v591
    %v635 = vpop.permute.xlu0 %634
    %638 = vset.pattern.permute.xlu0 0
    %639 = vperm.xlu0 %638, %v592
    %v640 = vpop.permute.xlu0 %639
    %643 = vset.pattern.permute.xlu0 0
    %644 = vperm.xlu0 %643, %v593
    %v645 = vpop.permute.xlu0 %644
    %648 = vset.pattern.permute.xlu0 0
    %649 = vperm.xlu0 %648, %v594
    %v650 = vpop.permute.xlu0 %649
    %653 = vset.pattern.permute.xlu0 0
    %654 = vperm.xlu0 %653, %v595
    %v655 = vpop.permute.xlu0 %654
    %658 = vset.pattern.permute.xlu0 0
    %659 = vperm.xlu0 %658, %v596
    %v660 = vpop.permute.xlu0 %659
    %663 = vset.pattern.permute.xlu0 0
    %664 = vperm.xlu0 %663, %v597
    %v665 = vpop.permute.xlu0 %664
    %668 = vset.pattern.permute.xlu0 0
    %669 = vperm.xlu0 %668, %v598
    %v670 = vpop.permute.xlu0 %669
    %673 = vset.pattern.permute.xlu0 0
    %674 = vperm.xlu0 %673, %v599
    %v675 = vpop.permute.xlu0 %674
    %678 = vset.pattern.permute.xlu0 0
    %679 = vperm.xlu0 %678, %v600
    %v680 = vpop.permute.xlu0 %679
    %683 = vset.pattern.permute.xlu0 0
    %684 = vperm.xlu0 %683, %v601
    %v685 = vpop.permute.xlu0 %684
    %688 = vset.pattern.permute.xlu0 0
    %689 = vperm.xlu0 %688, %v602
    %v690 = vpop.permute.xlu0 %689
    %693 = vset.pattern.permute.xlu0 0
    %694 = vperm.xlu0 %693, %v603
    %v695 = vpop.permute.xlu0 %694
    %698 = vset.pattern.permute.xlu0 0
    %699 = vperm.xlu0 %698, %v604
    %v700 = vpop.permute.xlu0 %699
    %703 = vset.pattern.permute.xlu0 0
    %704 = vperm.xlu0 %703, %v605
    %v705 = vpop.permute.xlu0 %704
    %708 = vset.pattern.permute.xlu0 0
    %709 = vperm.xlu0 %708, %v606
    %v710 = vpop.permute.xlu0 %709
    %713 = vset.pattern.permute.xlu0 0
    %714 = vperm.xlu0 %713, %v607
    %v715 = vpop.permute.xlu0 %714
    %718 = vset.pattern.permute.xlu0 0
    %719 = vperm.xlu0 %718, %v608
    %v720 = vpop.permute.xlu0 %719
    %723 = vset.pattern.permute.xlu0 0
    %724 = vperm.xlu0 %723, %v609
    %v725 = vpop.permute.xlu0 %724
    %728 = vset.pattern.permute.xlu0 0
    %729 = vperm.xlu0 %728, %v610
    %v730 = vpop.permute.xlu0 %729
    %733 = vset.pattern.permute.xlu0 0
    %734 = vperm.xlu0 %733, %v611
    %v735 = vpop.permute.xlu0 %734
    %738 = vset.pattern.permute.xlu0 0
    %739 = vperm.xlu0 %738, %v612
    %v740 = vpop.permute.xlu0 %739
    %743 = vset.pattern.permute.xlu0 0
    %744 = vperm.xlu0 %743, %v613
    %v745 = vpop.permute.xlu0 %744
    %748 = vset.pattern.permute.xlu0 0
    %749 = vperm.xlu0 %748, %v614
    %v750 = vpop.permute.xlu0 %749
    %753 = vset.pattern.permute.xlu0 0
    %754 = vperm.xlu0 %753, %v615
    %v755 = vpop.permute.xlu0 %754
    %758 = vset.pattern.permute.xlu0 0
    %759 = vperm.xlu0 %758, %v616
    %v760 = vpop.permute.xlu0 %759
    %763 = vset.pattern.permute.xlu0 0
    %764 = vperm.xlu0 %763, %v617
    %v765 = vpop.permute.xlu0 %764
    %768 = vset.pattern.permute.xlu0 0
    %769 = vperm.xlu0 %768, %v618
    %v770 = vpop.permute.xlu0 %769
    %773 = vset.pattern.permute.xlu0 0
    %774 = vperm.xlu0 %773, %v619
    %v775 = vpop.permute.xlu0 %774
    %778 = vset.pattern.permute.xlu0 0
    %779 = vperm.xlu0 %778, %v620
    %v780 = vpop.permute.xlu0 %779
    %783 = vset.pattern.permute.xlu0 0
    %784 = vperm.xlu0 %783, %v621
    %v785 = vpop.permute.xlu0 %784
    %788 = vset.pattern.permute.xlu0 0
    %789 = vperm.xlu0 %788, %v622
    %v790 = vpop.permute.xlu0 %789
    %793 = vset.pattern.permute.xlu0 0
    %794 = vperm.xlu0 %793, %v623
    %v795 = vpop.permute.xlu0 %794
    %798 = vset.pattern.permute.xlu0 0
    %799 = vperm.xlu0 %798, %v624
    %v800 = vpop.permute.xlu0 %799
    %803 = vset.pattern.permute.xlu0 0
    %804 = vperm.xlu0 %803, %v625
    %v805 = vpop.permute.xlu0 %804
    %808 = vset.pattern.permute.xlu0 0
    %809 = vperm.xlu0 %808, %v626
    %v810 = vpop.permute.xlu0 %809
    %813 = vset.pattern.permute.xlu0 0
    %814 = vperm.xlu0 %813, %v627
    %v815 = vpop.permute.xlu0 %814
    %818 = vset.pattern.permute.xlu0 0
    %819 = vperm.xlu0 %818, %v628
    %v820 = vpop.permute.xlu0 %819
    %823 = vset.pattern.permute.xlu0 0
    %824 = vperm.xlu0 %823, %v629
    %v825 = vpop.permute.xlu0 %824
    %828 = vset.pattern.permute.xlu0 0
    %829 = vperm.xlu0 %828, %v630
    %v830 = vpop.permute.xlu0 %829
    %v833 = vperm.slane %v631, 0
    %v834 = vperm.slane %v631, 1
    %v837 = vadd.f32 %v635, %v833
    %v838 = vadd.f32 %v635, %v834
    %v839 = vadd.f32 %v640, %v833
    %v840 = vadd.f32 %v640, %v834
    %v841 = vadd.f32 %v645, %v833
    %v842 = vadd.f32 %v645, %v834
    %v843 = vadd.f32 %v650, %v833
    %v844 = vadd.f32 %v650, %v834
    %v845 = vadd.f32 %v655, %v833
    %v846 = vadd.f32 %v655, %v834
    %v847 = vadd.f32 %v660, %v833
    %v848 = vadd.f32 %v660, %v834
    %v849 = vadd.f32 %v665, %v833
    %v850 = vadd.f32 %v665, %v834
    %v851 = vadd.f32 %v670, %v833
    %v852 = vadd.f32 %v670, %v834
    %v853 = vadd.f32 %v675, %v833
    %v854 = vadd.f32 %v675, %v834
    %v855 = vadd.f32 %v680, %v833
    %v856 = vadd.f32 %v680, %v834
    %v857 = vadd.f32 %v685, %v833
    %v858 = vadd.f32 %v685, %v834
    %v859 = vadd.f32 %v690, %v833
    %v860 = vadd.f32 %v690, %v834
    %v861 = vadd.f32 %v695, %v833
    %v862 = vadd.f32 %v695, %v834
    %v863 = vadd.f32 %v700, %v833
    %v864 = vadd.f32 %v700, %v834
    %v865 = vadd.f32 %v705, %v833
    %v866 = vadd.f32 %v705, %v834
    %v867 = vadd.f32 %v710, %v833
    %v868 = vadd.f32 %v710, %v834
    %v869 = vadd.f32 %v715, %v833
    %v870 = vadd.f32 %v715, %v834
    %v871 = vadd.f32 %v720, %v833
    %v872 = vadd.f32 %v720, %v834
    %v873 = vadd.f32 %v725, %v833
    %v874 = vadd.f32 %v725, %v834
    %v875 = vadd.f32 %v730, %v833
    %v876 = vadd.f32 %v730, %v834
    %v877 = vadd.f32 %v735, %v833
    %v878 = vadd.f32 %v735, %v834
    %v879 = vadd.f32 %v740, %v833
    %v880 = vadd.f32 %v740, %v834
    %v881 = vadd.f32 %v745, %v833
    %v882 = vadd.f32 %v745, %v834
    %v883 = vadd.f32 %v750, %v833
    %v884 = vadd.f32 %v750, %v834
    %v885 = vadd.f32 %v755, %v833
    %v886 = vadd.f32 %v755, %v834
    %v887 = vadd.f32 %v760, %v833
    %v888 = vadd.f32 %v760, %v834
    %v889 = vadd.f32 %v765, %v833
    %v890 = vadd.f32 %v765, %v834
    %v891 = vadd.f32 %v770, %v833
    %v892 = vadd.f32 %v770, %v834
    %v893 = vadd.f32 %v775, %v833
    %v894 = vadd.f32 %v775, %v834
    %v895 = vadd.f32 %v780, %v833
    %v896 = vadd.f32 %v780, %v834
    %v897 = vadd.f32 %v785, %v833
    %v898 = vadd.f32 %v785, %v834
    %v899 = vadd.f32 %v790, %v833
    %v900 = vadd.f32 %v790, %v834
    %v901 = vadd.f32 %v795, %v833
    %v902 = vadd.f32 %v795, %v834
    %v903 = vadd.f32 %v800, %v833
    %v904 = vadd.f32 %v800, %v834
    %v905 = vadd.f32 %v805, %v833
    %v906 = vadd.f32 %v805, %v834
    %v907 = vadd.f32 %v810, %v833
    %v908 = vadd.f32 %v810, %v834
    %v909 = vadd.f32 %v815, %v833
    %v910 = vadd.f32 %v815, %v834
    %v911 = vadd.f32 %v820, %v833
    %v912 = vadd.f32 %v820, %v834
    %v913 = vadd.f32 %v825, %v833
    %v914 = vadd.f32 %v825, %v834
    %v915 = vadd.f32 %v830, %v833
    %v916 = vadd.f32 %v830, %v834
    %v917 = vmul.f32 %v335, 2.0
    %v918 = vmul.f32 %v472, 2.0
    %v919 = vmul.f32 %v338, 2.0
    %v920 = vmul.f32 %v475, 2.0
    %v921 = vmul.f32 %v341, 2.0
    %v922 = vmul.f32 %v478, 2.0
    %v923 = vmul.f32 %v344, 2.0
    %v924 = vmul.f32 %v481, 2.0
    %v925 = vmul.f32 %v347, 2.0
    %v926 = vmul.f32 %v484, 2.0
    %v927 = vmul.f32 %v350, 2.0
    %v928 = vmul.f32 %v487, 2.0
    %v929 = vmul.f32 %v353, 2.0
    %v930 = vmul.f32 %v490, 2.0
    %v931 = vmul.f32 %v356, 2.0
    %v932 = vmul.f32 %v493, 2.0
    %v933 = vmul.f32 %v359, 2.0
    %v934 = vmul.f32 %v496, 2.0
    %v935 = vmul.f32 %v362, 2.0
    %v936 = vmul.f32 %v499, 2.0
    %v937 = vmul.f32 %v365, 2.0
    %v938 = vmul.f32 %v502, 2.0
    %v939 = vmul.f32 %v368, 2.0
    %v940 = vmul.f32 %v505, 2.0
    %v941 = vmul.f32 %v371, 2.0
    %v942 = vmul.f32 %v508, 2.0
    %v943 = vmul.f32 %v374, 2.0
    %v944 = vmul.f32 %v511, 2.0
    %v945 = vmul.f32 %v377, 2.0
    %v946 = vmul.f32 %v514, 2.0
    %v947 = vmul.f32 %v380, 2.0
    %v948 = vmul.f32 %v517, 2.0
    %v949 = vmul.f32 %v383, 2.0
    %v950 = vmul.f32 %v520, 2.0
    %v951 = vmul.f32 %v386, 2.0
    %v952 = vmul.f32 %v523, 2.0
    %v953 = vmul.f32 %v389, 2.0
    %v954 = vmul.f32 %v526, 2.0
    %v955 = vmul.f32 %v392, 2.0
    %v956 = vmul.f32 %v529, 2.0
    %v957 = vmul.f32 %v395, 2.0
    %v958 = vmul.f32 %v532, 2.0
    %v959 = vmul.f32 %v398, 2.0
    %v960 = vmul.f32 %v535, 2.0
    %v961 = vmul.f32 %v401, 2.0
    %v962 = vmul.f32 %v538, 2.0
    %v963 = vmul.f32 %v404, 2.0
    %v964 = vmul.f32 %v541, 2.0
    %v965 = vmul.f32 %v407, 2.0
    %v966 = vmul.f32 %v544, 2.0
    %v967 = vmul.f32 %v410, 2.0
    %v968 = vmul.f32 %v547, 2.0
    %v969 = vmul.f32 %v413, 2.0
    %v970 = vmul.f32 %v550, 2.0
    %v971 = vmul.f32 %v416, 2.0
    %v972 = vmul.f32 %v553, 2.0
    %v973 = vmul.f32 %v419, 2.0
    %v974 = vmul.f32 %v556, 2.0
    %v975 = vmul.f32 %v422, 2.0
    %v976 = vmul.f32 %v559, 2.0
    %v977 = vmul.f32 %v425, 2.0
    %v978 = vmul.f32 %v562, 2.0
    %v979 = vmul.f32 %v428, 2.0
    %v980 = vmul.f32 %v565, 2.0
    %v981 = vmul.f32 %v431, 2.0
    %v982 = vmul.f32 %v568, 2.0
    %v983 = vmul.f32 %v434, 2.0
    %v984 = vmul.f32 %v571, 2.0
    %v985 = vmul.f32 %v437, 2.0
    %v986 = vmul.f32 %v574, 2.0
    %v987 = vmul.f32 %v440, 2.0
    %v988 = vmul.f32 %v577, 2.0
    %v989 = vmul.f32 %v443, 2.0
    %v990 = vmul.f32 %v580, 2.0
    %v991 = vmul.f32 %v446, 2.0
    %v992 = vmul.f32 %v583, 2.0
    %v993 = vmul.f32 %v449, 2.0
    %v994 = vmul.f32 %v586, 2.0
    %v995 = vmul.f32 %v452, 2.0
    %v996 = vmul.f32 %v589, 2.0
    %v997 = vsub.f32 %v837, %v917
    %v998 = vsub.f32 %v838, %v918
    %v999 = vsub.f32 %v839, %v919
    %v1000 = vsub.f32 %v840, %v920
    %v1001 = vsub.f32 %v841, %v921
    %v1002 = vsub.f32 %v842, %v922
    %v1003 = vsub.f32 %v843, %v923
    %v1004 = vsub.f32 %v844, %v924
    %v1005 = vsub.f32 %v845, %v925
    %v1006 = vsub.f32 %v846, %v926
    %v1007 = vsub.f32 %v847, %v927
    %v1008 = vsub.f32 %v848, %v928
    %v1009 = vsub.f32 %v849, %v929
    %v1010 = vsub.f32 %v850, %v930
    %v1011 = vsub.f32 %v851, %v931
    %v1012 = vsub.f32 %v852, %v932
    %v1013 = vsub.f32 %v853, %v933
    %v1014 = vsub.f32 %v854, %v934
    %v1015 = vsub.f32 %v855, %v935
    %v1016 = vsub.f32 %v856, %v936
    %v1017 = vsub.f32 %v857, %v937
    %v1018 = vsub.f32 %v858, %v938
    %v1019 = vsub.f32 %v859, %v939
    %v1020 = vsub.f32 %v860, %v940
    %v1021 = vsub.f32 %v861, %v941
    %v1022 = vsub.f32 %v862, %v942
    %v1023 = vsub.f32 %v863, %v943
    %v1024 = vsub.f32 %v864, %v944
    %v1025 = vsub.f32 %v865, %v945
    %v1026 = vsub.f32 %v866, %v946
    %v1027 = vsub.f32 %v867, %v947
    %v1028 = vsub.f32 %v868, %v948
    %v1029 = vsub.f32 %v869, %v949
    %v1030 = vsub.f32 %v870, %v950
    %v1031 = vsub.f32 %v871, %v951
    %v1032 = vsub.f32 %v872, %v952
    %v1033 = vsub.f32 %v873, %v953
    %v1034 = vsub.f32 %v874, %v954
    %v1035 = vsub.f32 %v875, %v955
    %v1036 = vsub.f32 %v876, %v956
    %v1037 = vsub.f32 %v877, %v957
    %v1038 = vsub.f32 %v878, %v958
    %v1039 = vsub.f32 %v879, %v959
    %v1040 = vsub.f32 %v880, %v960
    %v1041 = vsub.f32 %v881, %v961
    %v1042 = vsub.f32 %v882, %v962
    %v1043 = vsub.f32 %v883, %v963
    %v1044 = vsub.f32 %v884, %v964
    %v1045 = vsub.f32 %v885, %v965
    %v1046 = vsub.f32 %v886, %v966
    %v1047 = vsub.f32 %v887, %v967
    %v1048 = vsub.f32 %v888, %v968
    %v1049 = vsub.f32 %v889, %v969
    %v1050 = vsub.f32 %v890, %v970
    %v1051 = vsub.f32 %v891, %v971
    %v1052 = vsub.f32 %v892, %v972
    %v1053 = vsub.f32 %v893, %v973
    %v1054 = vsub.f32 %v894, %v974
    %v1055 = vsub.f32 %v895, %v975
    %v1056 = vsub.f32 %v896, %v976
    %v1057 = vsub.f32 %v897, %v977
    %v1058 = vsub.f32 %v898, %v978
    %v1059 = vsub.f32 %v899, %v979
    %v1060 = vsub.f32 %v900, %v980
    %v1061 = vsub.f32 %v901, %v981
    %v1062 = vsub.f32 %v902, %v982
    %v1063 = vsub.f32 %v903, %v983
    %v1064 = vsub.f32 %v904, %v984
    %v1065 = vsub.f32 %v905, %v985
    %v1066 = vsub.f32 %v906, %v986
    %v1067 = vsub.f32 %v907, %v987
    %v1068 = vsub.f32 %v908, %v988
    %v1069 = vsub.f32 %v909, %v989
    %v1070 = vsub.f32 %v910, %v990
    %v1071 = vsub.f32 %v911, %v991
    %v1072 = vsub.f32 %v912, %v992
    %v1073 = vsub.f32 %v913, %v993
    %v1074 = vsub.f32 %v914, %v994
    %v1075 = vsub.f32 %v915, %v995
    %v1076 = vsub.f32 %v916, %v996
    %v1077 = vmax.f32 %v997, 0.0
    %v1078 = vmax.f32 %v998, 0.0
    %v1079 = vmax.f32 %v999, 0.0
    %v1080 = vmax.f32 %v1000, 0.0
    %v1081 = vmax.f32 %v1001, 0.0
    %v1082 = vmax.f32 %v1002, 0.0
    %v1083 = vmax.f32 %v1003, 0.0
    %v1084 = vmax.f32 %v1004, 0.0
    %v1085 = vmax.f32 %v1005, 0.0
    %v1086 = vmax.f32 %v1006, 0.0
    %v1087 = vmax.f32 %v1007, 0.0
    %v1088 = vmax.f32 %v1008, 0.0
    %v1089 = vmax.f32 %v1009, 0.0
    %v1090 = vmax.f32 %v1010, 0.0
    %v1091 = vmax.f32 %v1011, 0.0
    %v1092 = vmax.f32 %v1012, 0.0
    %v1093 = vmax.f32 %v1013, 0.0
    %v1094 = vmax.f32 %v1014, 0.0
    %v1095 = vmax.f32 %v1015, 0.0
    %v1096 = vmax.f32 %v1016, 0.0
    %v1097 = vmax.f32 %v1017, 0.0
    %v1098 = vmax.f32 %v1018, 0.0
    %v1099 = vmax.f32 %v1019, 0.0
    %v1100 = vmax.f32 %v1020, 0.0
    %v1101 = vmax.f32 %v1021, 0.0
    %v1102 = vmax.f32 %v1022, 0.0
    %v1103 = vmax.f32 %v1023, 0.0
    %v1104 = vmax.f32 %v1024, 0.0
    %v1105 = vmax.f32 %v1025, 0.0
    %v1106 = vmax.f32 %v1026, 0.0
    %v1107 = vmax.f32 %v1027, 0.0
    %v1108 = vmax.f32 %v1028, 0.0
    %v1109 = vmax.f32 %v1029, 0.0
    %v1110 = vmax.f32 %v1030, 0.0
    %v1111 = vmax.f32 %v1031, 0.0
    %v1112 = vmax.f32 %v1032, 0.0
    %v1113 = vmax.f32 %v1033, 0.0
    %v1114 = vmax.f32 %v1034, 0.0
    %v1115 = vmax.f32 %v1035, 0.0
    %v1116 = vmax.f32 %v1036, 0.0
    %v1117 = vmax.f32 %v1037, 0.0
    %v1118 = vmax.f32 %v1038, 0.0
    %v1119 = vmax.f32 %v1039, 0.0
    %v1120 = vmax.f32 %v1040, 0.0
    %v1121 = vmax.f32 %v1041, 0.0
    %v1122 = vmax.f32 %v1042, 0.0
    %v1123 = vmax.f32 %v1043, 0.0
    %v1124 = vmax.f32 %v1044, 0.0
    %v1125 = vmax.f32 %v1045, 0.0
    %v1126 = vmax.f32 %v1046, 0.0
    %v1127 = vmax.f32 %v1047, 0.0
    %v1128 = vmax.f32 %v1048, 0.0
    %v1129 = vmax.f32 %v1049, 0.0
    %v1130 = vmax.f32 %v1050, 0.0
    %v1131 = vmax.f32 %v1051, 0.0
    %v1132 = vmax.f32 %v1052, 0.0
    %v1133 = vmax.f32 %v1053, 0.0
    %v1134 = vmax.f32 %v1054, 0.0
    %v1135 = vmax.f32 %v1055, 0.0
    %v1136 = vmax.f32 %v1056, 0.0
    %v1137 = vmax.f32 %v1057, 0.0
    %v1138 = vmax.f32 %v1058, 0.0
    %v1139 = vmax.f32 %v1059, 0.0
    %v1140 = vmax.f32 %v1060, 0.0
    %v1141 = vmax.f32 %v1061, 0.0
    %v1142 = vmax.f32 %v1062, 0.0
    %v1143 = vmax.f32 %v1063, 0.0
    %v1144 = vmax.f32 %v1064, 0.0
    %v1145 = vmax.f32 %v1065, 0.0
    %v1146 = vmax.f32 %v1066, 0.0
    %v1147 = vmax.f32 %v1067, 0.0
    %v1148 = vmax.f32 %v1068, 0.0
    %v1149 = vmax.f32 %v1069, 0.0
    %v1150 = vmax.f32 %v1070, 0.0
    %v1151 = vmax.f32 %v1071, 0.0
    %v1152 = vmax.f32 %v1072, 0.0
    %v1153 = vmax.f32 %v1073, 0.0
    %v1154 = vmax.f32 %v1074, 0.0
    %v1155 = vmax.f32 %v1075, 0.0
    %v1156 = vmax.f32 %v1076, 0.0
    %v1157 = vstv %s26
    %v1158 = vmul.f32 %v1157, %v1077
    %v1159 = vmul.f32 %v1157, %v1078
    %v1160 = vmul.f32 %v1157, %v1079
    %v1161 = vmul.f32 %v1157, %v1080
    %v1162 = vmul.f32 %v1157, %v1081
    %v1163 = vmul.f32 %v1157, %v1082
    %v1164 = vmul.f32 %v1157, %v1083
    %v1165 = vmul.f32 %v1157, %v1084
    %v1166 = vmul.f32 %v1157, %v1085
    %v1167 = vmul.f32 %v1157, %v1086
    %v1168 = vmul.f32 %v1157, %v1087
    %v1169 = vmul.f32 %v1157, %v1088
    %v1170 = vmul.f32 %v1157, %v1089
    %v1171 = vmul.f32 %v1157, %v1090
    %v1172 = vmul.f32 %v1157, %v1091
    %v1173 = vmul.f32 %v1157, %v1092
    %v1174 = vmul.f32 %v1157, %v1093
    %v1175 = vmul.f32 %v1157, %v1094
    %v1176 = vmul.f32 %v1157, %v1095
    %v1177 = vmul.f32 %v1157, %v1096
    %v1178 = vmul.f32 %v1157, %v1097
    %v1179 = vmul.f32 %v1157, %v1098
    %v1180 = vmul.f32 %v1157, %v1099
    %v1181 = vmul.f32 %v1157, %v1100
    %v1182 = vmul.f32 %v1157, %v1101
    %v1183 = vmul.f32 %v1157, %v1102
    %v1184 = vmul.f32 %v1157, %v1103
    %v1185 = vmul.f32 %v1157, %v1104
    %v1186 = vmul.f32 %v1157, %v1105
    %v1187 = vmul.f32 %v1157, %v1106
    %v1188 = vmul.f32 %v1157, %v1107
    %v1189 = vmul.f32 %v1157, %v1108
    %v1190 = vmul.f32 %v1157, %v1109
    %v1191 = vmul.f32 %v1157, %v1110
    %v1192 = vmul.f32 %v1157, %v1111
    %v1193 = vmul.f32 %v1157, %v1112
    %v1194 = vmul.f32 %v1157, %v1113
    %v1195 = vmul.f32 %v1157, %v1114
    %v1196 = vmul.f32 %v1157, %v1115
    %v1197 = vmul.f32 %v1157, %v1116
    %v1198 = vmul.f32 %v1157, %v1117
    %v1199 = vmul.f32 %v1157, %v1118
    %v1200 = vmul.f32 %v1157, %v1119
    %v1201 = vmul.f32 %v1157, %v1120
    %v1202 = vmul.f32 %v1157, %v1121
    %v1203 = vmul.f32 %v1157, %v1122
    %v1204 = vmul.f32 %v1157, %v1123
    %v1205 = vmul.f32 %v1157, %v1124
    %v1206 = vmul.f32 %v1157, %v1125
    %v1207 = vmul.f32 %v1157, %v1126
    %v1208 = vmul.f32 %v1157, %v1127
    %v1209 = vmul.f32 %v1157, %v1128
    %v1210 = vmul.f32 %v1157, %v1129
    %v1211 = vmul.f32 %v1157, %v1130
    %v1212 = vmul.f32 %v1157, %v1131
    %v1213 = vmul.f32 %v1157, %v1132
    %v1214 = vmul.f32 %v1157, %v1133
    %v1215 = vmul.f32 %v1157, %v1134
    %v1216 = vmul.f32 %v1157, %v1135
    %v1217 = vmul.f32 %v1157, %v1136
    %v1218 = vmul.f32 %v1157, %v1137
    %v1219 = vmul.f32 %v1157, %v1138
    %v1220 = vmul.f32 %v1157, %v1139
    %v1221 = vmul.f32 %v1157, %v1140
    %v1222 = vmul.f32 %v1157, %v1141
    %v1223 = vmul.f32 %v1157, %v1142
    %v1224 = vmul.f32 %v1157, %v1143
    %v1225 = vmul.f32 %v1157, %v1144
    %v1226 = vmul.f32 %v1157, %v1145
    %v1227 = vmul.f32 %v1157, %v1146
    %v1228 = vmul.f32 %v1157, %v1147
    %v1229 = vmul.f32 %v1157, %v1148
    %v1230 = vmul.f32 %v1157, %v1149
    %v1231 = vmul.f32 %v1157, %v1150
    %v1232 = vmul.f32 %v1157, %v1151
    %v1233 = vmul.f32 %v1157, %v1152
    %v1234 = vmul.f32 %v1157, %v1153
    %v1235 = vmul.f32 %v1157, %v1154
    %v1236 = vmul.f32 %v1157, %v1155
    %v1237 = vmul.f32 %v1157, %v1156
    %v1238 = vmul.f32 %v1158, 1.442695
    %v1239 = vpow.pop %v1238
    %v1240 = vmul.f32 %v1159, 1.442695
    %v1241 = vpow.pop %v1240
    %v1242 = vmul.f32 %v1160, 1.442695
    %v1243 = vpow.pop %v1242
    %v1244 = vmul.f32 %v1161, 1.442695
    %v1245 = vpow.pop %v1244
    %v1246 = vmul.f32 %v1162, 1.442695
    %v1247 = vpow.pop %v1246
    %v1248 = vmul.f32 %v1163, 1.442695
    %v1249 = vpow.pop %v1248
    %v1250 = vmul.f32 %v1164, 1.442695
    %v1251 = vpow.pop %v1250
    %v1252 = vmul.f32 %v1165, 1.442695
    %v1253 = vpow.pop %v1252
    %v1254 = vmul.f32 %v1166, 1.442695
    %v1255 = vpow.pop %v1254
    %v1256 = vmul.f32 %v1167, 1.442695
    %v1257 = vpow.pop %v1256
    %v1258 = vmul.f32 %v1168, 1.442695
    %v1259 = vpow.pop %v1258
    %v1260 = vmul.f32 %v1169, 1.442695
    %v1261 = vpow.pop %v1260
    %v1262 = vmul.f32 %v1170, 1.442695
    %v1263 = vpow.pop %v1262
    %v1264 = vmul.f32 %v1171, 1.442695
    %v1265 = vpow.pop %v1264
    %v1266 = vmul.f32 %v1172, 1.442695
    %v1267 = vpow.pop %v1266
    %v1268 = vmul.f32 %v1173, 1.442695
    %v1269 = vpow.pop %v1268
    %v1270 = vmul.f32 %v1174, 1.442695
    %v1271 = vpow.pop %v1270
    %v1272 = vmul.f32 %v1175, 1.442695
    %v1273 = vpow.pop %v1272
    %v1274 = vmul.f32 %v1176, 1.442695
    %v1275 = vpow.pop %v1274
    %v1276 = vmul.f32 %v1177, 1.442695
    %v1277 = vpow.pop %v1276
    %v1278 = vmul.f32 %v1178, 1.442695
    %v1279 = vpow.pop %v1278
    %v1280 = vmul.f32 %v1179, 1.442695
    %v1281 = vpow.pop %v1280
    %v1282 = vmul.f32 %v1180, 1.442695
    %v1283 = vpow.pop %v1282
    %v1284 = vmul.f32 %v1181, 1.442695
    %v1285 = vpow.pop %v1284
    %v1286 = vmul.f32 %v1182, 1.442695
    %v1287 = vpow.pop %v1286
    %v1288 = vmul.f32 %v1183, 1.442695
    %v1289 = vpow.pop %v1288
    %v1290 = vmul.f32 %v1184, 1.442695
    %v1291 = vpow.pop %v1290
    %v1292 = vmul.f32 %v1185, 1.442695
    %v1293 = vpow.pop %v1292
    %v1294 = vmul.f32 %v1186, 1.442695
    %v1295 = vpow.pop %v1294
    %v1296 = vmul.f32 %v1187, 1.442695
    %v1297 = vpow.pop %v1296
    %v1298 = vmul.f32 %v1188, 1.442695
    %v1299 = vpow.pop %v1298
    %v1300 = vmul.f32 %v1189, 1.442695
    %v1301 = vpow.pop %v1300
    %v1302 = vmul.f32 %v1190, 1.442695
    %v1303 = vpow.pop %v1302
    %v1304 = vmul.f32 %v1191, 1.442695
    %v1305 = vpow.pop %v1304
    %v1306 = vmul.f32 %v1192, 1.442695
    %v1307 = vpow.pop %v1306
    %v1308 = vmul.f32 %v1193, 1.442695
    %v1309 = vpow.pop %v1308
    %v1310 = vmul.f32 %v1194, 1.442695
    %v1311 = vpow.pop %v1310
    %v1312 = vmul.f32 %v1195, 1.442695
    %v1313 = vpow.pop %v1312
    %v1314 = vmul.f32 %v1196, 1.442695
    %v1315 = vpow.pop %v1314
    %v1316 = vmul.f32 %v1197, 1.442695
    %v1317 = vpow.pop %v1316
    %v1318 = vmul.f32 %v1198, 1.442695
    %v1319 = vpow.pop %v1318
    %v1320 = vmul.f32 %v1199, 1.442695
    %v1321 = vpow.pop %v1320
    %v1322 = vmul.f32 %v1200, 1.442695
    %v1323 = vpow.pop %v1322
    %v1324 = vmul.f32 %v1201, 1.442695
    %v1325 = vpow.pop %v1324
    %v1326 = vmul.f32 %v1202, 1.442695
    %v1327 = vpow.pop %v1326
    %v1328 = vmul.f32 %v1203, 1.442695
    %v1329 = vpow.pop %v1328
    %v1330 = vmul.f32 %v1204, 1.442695
    %v1331 = vpow.pop %v1330
    %v1332 = vmul.f32 %v1205, 1.442695
    %v1333 = vpow.pop %v1332
    %v1334 = vmul.f32 %v1206, 1.442695
    %v1335 = vpow.pop %v1334
    %v1336 = vmul.f32 %v1207, 1.442695
    %v1337 = vpow.pop %v1336
    %v1338 = vmul.f32 %v1208, 1.442695
    %v1339 = vpow.pop %v1338
    %v1340 = vmul.f32 %v1209, 1.442695
    %v1341 = vpow.pop %v1340
    %v1342 = vmul.f32 %v1210, 1.442695
    %v1343 = vpow.pop %v1342
    %v1344 = vmul.f32 %v1211, 1.442695
    %v1345 = vpow.pop %v1344
    %v1346 = vmul.f32 %v1212, 1.442695
    %v1347 = vpow.pop %v1346
    %v1348 = vmul.f32 %v1213, 1.442695
    %v1349 = vpow.pop %v1348
    %v1350 = vmul.f32 %v1214, 1.442695
    %v1351 = vpow.pop %v1350
    %v1352 = vmul.f32 %v1215, 1.442695
    %v1353 = vpow.pop %v1352
    %v1354 = vmul.f32 %v1216, 1.442695
    %v1355 = vpow.pop %v1354
    %v1356 = vmul.f32 %v1217, 1.442695
    %v1357 = vpow.pop %v1356
    %v1358 = vmul.f32 %v1218, 1.442695
    %v1359 = vpow.pop %v1358
    %v1360 = vmul.f32 %v1219, 1.442695
    %v1361 = vpow.pop %v1360
    %v1362 = vmul.f32 %v1220, 1.442695
    %v1363 = vpow.pop %v1362
    %v1364 = vmul.f32 %v1221, 1.442695
    %v1365 = vpow.pop %v1364
    %v1366 = vmul.f32 %v1222, 1.442695
    %v1367 = vpow.pop %v1366
    %v1368 = vmul.f32 %v1223, 1.442695
    %v1369 = vpow.pop %v1368
    %v1370 = vmul.f32 %v1224, 1.442695
    %v1371 = vpow.pop %v1370
    %v1372 = vmul.f32 %v1225, 1.442695
    %v1373 = vpow.pop %v1372
    %v1374 = vmul.f32 %v1226, 1.442695
    %v1375 = vpow.pop %v1374
    %v1376 = vmul.f32 %v1227, 1.442695
    %v1377 = vpow.pop %v1376
    %v1378 = vmul.f32 %v1228, 1.442695
    %v1379 = vpow.pop %v1378
    %v1380 = vmul.f32 %v1229, 1.442695
    %v1381 = vpow.pop %v1380
    %v1382 = vmul.f32 %v1230, 1.442695
    %v1383 = vpow.pop %v1382
    %v1384 = vmul.f32 %v1231, 1.442695
    %v1385 = vpow.pop %v1384
    %v1386 = vmul.f32 %v1232, 1.442695
    %v1387 = vpow.pop %v1386
    %v1388 = vmul.f32 %v1233, 1.442695
    %v1389 = vpow.pop %v1388
    %v1390 = vmul.f32 %v1234, 1.442695
    %v1391 = vpow.pop %v1390
    %v1392 = vmul.f32 %v1235, 1.442695
    %v1393 = vpow.pop %v1392
    %v1394 = vmul.f32 %v1236, 1.442695
    %v1395 = vpow.pop %v1394
    %v1396 = vmul.f32 %v1237, 1.442695
    %v1397 = vpow.pop %v1396
    %v1398 = vstv %s27
    %v1399 = vmul.f32 %v1398, %v1239
    %v1400 = vmul.f32 %v1398, %v1241
    %v1401 = vmul.f32 %v1398, %v1243
    %v1402 = vmul.f32 %v1398, %v1245
    %v1403 = vmul.f32 %v1398, %v1247
    %v1404 = vmul.f32 %v1398, %v1249
    %v1405 = vmul.f32 %v1398, %v1251
    %v1406 = vmul.f32 %v1398, %v1253
    %v1407 = vmul.f32 %v1398, %v1255
    %v1408 = vmul.f32 %v1398, %v1257
    %v1409 = vmul.f32 %v1398, %v1259
    %v1410 = vmul.f32 %v1398, %v1261
    %v1411 = vmul.f32 %v1398, %v1263
    %v1412 = vmul.f32 %v1398, %v1265
    %v1413 = vmul.f32 %v1398, %v1267
    %v1414 = vmul.f32 %v1398, %v1269
    %v1415 = vmul.f32 %v1398, %v1271
    %v1416 = vmul.f32 %v1398, %v1273
    %v1417 = vmul.f32 %v1398, %v1275
    %v1418 = vmul.f32 %v1398, %v1277
    %v1419 = vmul.f32 %v1398, %v1279
    %v1420 = vmul.f32 %v1398, %v1281
    %v1421 = vmul.f32 %v1398, %v1283
    %v1422 = vmul.f32 %v1398, %v1285
    %v1423 = vmul.f32 %v1398, %v1287
    %v1424 = vmul.f32 %v1398, %v1289
    %v1425 = vmul.f32 %v1398, %v1291
    %v1426 = vmul.f32 %v1398, %v1293
    %v1427 = vmul.f32 %v1398, %v1295
    %v1428 = vmul.f32 %v1398, %v1297
    %v1429 = vmul.f32 %v1398, %v1299
    %v1430 = vmul.f32 %v1398, %v1301
    %v1431 = vmul.f32 %v1398, %v1303
    %v1432 = vmul.f32 %v1398, %v1305
    %v1433 = vmul.f32 %v1398, %v1307
    %v1434 = vmul.f32 %v1398, %v1309
    %v1435 = vmul.f32 %v1398, %v1311
    %v1436 = vmul.f32 %v1398, %v1313
    %v1437 = vmul.f32 %v1398, %v1315
    %v1438 = vmul.f32 %v1398, %v1317
    %v1439 = vmul.f32 %v1398, %v1319
    %v1440 = vmul.f32 %v1398, %v1321
    %v1441 = vmul.f32 %v1398, %v1323
    %v1442 = vmul.f32 %v1398, %v1325
    %v1443 = vmul.f32 %v1398, %v1327
    %v1444 = vmul.f32 %v1398, %v1329
    %v1445 = vmul.f32 %v1398, %v1331
    %v1446 = vmul.f32 %v1398, %v1333
    %v1447 = vmul.f32 %v1398, %v1335
    %v1448 = vmul.f32 %v1398, %v1337
    %v1449 = vmul.f32 %v1398, %v1339
    %v1450 = vmul.f32 %v1398, %v1341
    %v1451 = vmul.f32 %v1398, %v1343
    %v1452 = vmul.f32 %v1398, %v1345
    %v1453 = vmul.f32 %v1398, %v1347
    %v1454 = vmul.f32 %v1398, %v1349
    %v1455 = vmul.f32 %v1398, %v1351
    %v1456 = vmul.f32 %v1398, %v1353
    %v1457 = vmul.f32 %v1398, %v1355
    %v1458 = vmul.f32 %v1398, %v1357
    %v1459 = vmul.f32 %v1398, %v1359
    %v1460 = vmul.f32 %v1398, %v1361
    %v1461 = vmul.f32 %v1398, %v1363
    %v1462 = vmul.f32 %v1398, %v1365
    %v1463 = vmul.f32 %v1398, %v1367
    %v1464 = vmul.f32 %v1398, %v1369
    %v1465 = vmul.f32 %v1398, %v1371
    %v1466 = vmul.f32 %v1398, %v1373
    %v1467 = vmul.f32 %v1398, %v1375
    %v1468 = vmul.f32 %v1398, %v1377
    %v1469 = vmul.f32 %v1398, %v1379
    %v1470 = vmul.f32 %v1398, %v1381
    %v1471 = vmul.f32 %v1398, %v1383
    %v1472 = vmul.f32 %v1398, %v1385
    %v1473 = vmul.f32 %v1398, %v1387
    %v1474 = vmul.f32 %v1398, %v1389
    %v1475 = vmul.f32 %v1398, %v1391
    %v1476 = vmul.f32 %v1398, %v1393
    %v1477 = vmul.f32 %v1398, %v1395
    %v1478 = vmul.f32 %v1398, %v1397
    %1479 = vst [vmem:[#allocation4] sm:$0xff] %v1399
    %1480 = vst [vmem:[#allocation4 + $0x8] sm:$0xff] %v1400
    %1481 = vst [vmem:[#allocation4 + $0x10] sm:$0xff] %v1401
    %1482 = vst [vmem:[#allocation4 + $0x18] sm:$0xff] %v1402
    %1483 = vst [vmem:[#allocation4 + $0x20] sm:$0xff] %v1403
    %1484 = vst [vmem:[#allocation4 + $0x28] sm:$0xff] %v1404
    %1485 = vst [vmem:[#allocation4 + $0x30] sm:$0xff] %v1405
    %1486 = vst [vmem:[#allocation4 + $0x38] sm:$0xff] %v1406
    %1487 = vst [vmem:[#allocation4 + $0x40] sm:$0xff] %v1407
    %1488 = vst [vmem:[#allocation4 + $0x48] sm:$0xff] %v1408
    %1489 = vst [vmem:[#allocation4 + $0x50] sm:$0xff] %v1409
    %1490 = vst [vmem:[#allocation4 + $0x58] sm:$0xff] %v1410
    %1491 = vst [vmem:[#allocation4 + $0x60] sm:$0xff] %v1411
    %1492 = vst [vmem:[#allocation4 + $0x68] sm:$0xff] %v1412
    %1493 = vst [vmem:[#allocation4 + $0x70] sm:$0xff] %v1413
    %1494 = vst [vmem:[#allocation4 + $0x78] sm:$0xff] %v1414
    %1495 = vst [vmem:[#allocation4 + $0x80] sm:$0xff] %v1415
    %1496 = vst [vmem:[#allocation4 + $0x88] sm:$0xff] %v1416
    %1497 = vst [vmem:[#allocation4 + $0x90] sm:$0xff] %v1417
    %1498 = vst [vmem:[#allocation4 + $0x98] sm:$0xff] %v1418
    %1499 = vst [vmem:[#allocation4 + $0xa0] sm:$0xff] %v1419
    %1500 = vst [vmem:[#allocation4 + $0xa8] sm:$0xff] %v1420
    %1501 = vst [vmem:[#allocation4 + $0xb0] sm:$0xff] %v1421
    %1502 = vst [vmem:[#allocation4 + $0xb8] sm:$0xff] %v1422
    %1503 = vst [vmem:[#allocation4 + $0xc0] sm:$0xff] %v1423
    %1504 = vst [vmem:[#allocation4 + $0xc8] sm:$0xff] %v1424
    %1505 = vst [vmem:[#allocation4 + $0xd0] sm:$0xff] %v1425
    %1506 = vst [vmem:[#allocation4 + $0xd8] sm:$0xff] %v1426
    %1507 = vst [vmem:[#allocation4 + $0xe0] sm:$0xff] %v1427
    %1508 = vst [vmem:[#allocation4 + $0xe8] sm:$0xff] %v1428
    %1509 = vst [vmem:[#allocation4 + $0xf0] sm:$0xff] %v1429
    %1510 = vst [vmem:[#allocation4 + $0xf8] sm:$0xff] %v1430
    %1511 = vst [vmem:[#allocation4 + $0x100] sm:$0xff] %v1431
    %1512 = vst [vmem:[#allocation4 + $0x108] sm:$0xff] %v1432
    %1513 = vst [vmem:[#allocation4 + $0x110] sm:$0xff] %v1433
    %1514 = vst [vmem:[#allocation4 + $0x118] sm:$0xff] %v1434
    %1515 = vst [vmem:[#allocation4 + $0x120] sm:$0xff] %v1435
    %1516 = vst [vmem:[#allocation4 + $0x128] sm:$0xff] %v1436
    %1517 = vst [vmem:[#allocation4 + $0x130] sm:$0xff] %v1437
    %1518 = vst [vmem:[#allocation4 + $0x138] sm:$0xff] %v1438
    %1519 = vst [vmem:[#allocation4 + $0x140] sm:$0xff] %v1439
    %1520 = vst [vmem:[#allocation4 + $0x148] sm:$0xff] %v1440
    %1521 = vst [vmem:[#allocation4 + $0x150] sm:$0xff] %v1441
    %1522 = vst [vmem:[#allocation4 + $0x158] sm:$0xff] %v1442
    %1523 = vst [vmem:[#allocation4 + $0x160] sm:$0xff] %v1443
    %1524 = vst [vmem:[#allocation4 + $0x168] sm:$0xff] %v1444
    %1525 = vst [vmem:[#allocation4 + $0x170] sm:$0xff] %v1445
    %1526 = vst [vmem:[#allocation4 + $0x178] sm:$0xff] %v1446
    %1527 = vst [vmem:[#allocation4 + $0x180] sm:$0xff] %v1447
    %1528 = vst [vmem:[#allocation4 + $0x188] sm:$0xff] %v1448
    %1529 = vst [vmem:[#allocation4 + $0x190] sm:$0xff] %v1449
    %1530 = vst [vmem:[#allocation4 + $0x198] sm:$0xff] %v1450
    %1531 = vst [vmem:[#allocation4 + $0x1a0] sm:$0xff] %v1451
    %1532 = vst [vmem:[#allocation4 + $0x1a8] sm:$0xff] %v1452
    %1533 = vst [vmem:[#allocation4 + $0x1b0] sm:$0xff] %v1453
    %1534 = vst [vmem:[#allocation4 + $0x1b8] sm:$0xff] %v1454
    %1535 = vst [vmem:[#allocation4 + $0x1c0] sm:$0xff] %v1455
    %1536 = vst [vmem:[#allocation4 + $0x1c8] sm:$0xff] %v1456
    %1537 = vst [vmem:[#allocation4 + $0x1d0] sm:$0xff] %v1457
    %1538 = vst [vmem:[#allocation4 + $0x1d8] sm:$0xff] %v1458
    %1539 = vst [vmem:[#allocation4 + $0x1e0] sm:$0xff] %v1459
    %1540 = vst [vmem:[#allocation4 + $0x1e8] sm:$0xff] %v1460
    %1541 = vst [vmem:[#allocation4 + $0x1f0] sm:$0xff] %v1461
    %1542 = vst [vmem:[#allocation4 + $0x1f8] sm:$0xff] %v1462
    %1543 = vst [vmem:[#allocation4 + $0x200] sm:$0xff] %v1463
    %1544 = vst [vmem:[#allocation4 + $0x208] sm:$0xff] %v1464
    %1545 = vst [vmem:[#allocation4 + $0x210] sm:$0xff] %v1465
    %1546 = vst [vmem:[#allocation4 + $0x218] sm:$0xff] %v1466
    %1547 = vst [vmem:[#allocation4 + $0x220] sm:$0xff] %v1467
    %1548 = vst [vmem:[#allocation4 + $0x228] sm:$0xff] %v1468
    %1549 = vst [vmem:[#allocation4 + $0x230] sm:$0xff] %v1469
    %1550 = vst [vmem:[#allocation4 + $0x238] sm:$0xff] %v1470
    %1551 = vst [vmem:[#allocation4 + $0x240] sm:$0xff] %v1471
    %1552 = vst [vmem:[#allocation4 + $0x248] sm:$0xff] %v1472
    %1553 = vst [vmem:[#allocation4 + $0x250] sm:$0xff] %v1473
    %1554 = vst [vmem:[#allocation4 + $0x258] sm:$0xff] %v1474
    %1555 = vst [vmem:[#allocation4 + $0x260] sm:$0xff] %v1475
    %1556 = vst [vmem:[#allocation4 + $0x268] sm:$0xff] %v1476
    %1557 = vst [vmem:[#allocation4 + $0x270] sm:$0xff] %v1477
    %1558 = vst [vmem:[#allocation4 + $0x278] sm:$0xff] %v1478
    // Predicated region
    $region26: #{tpu_custom_call.1} parent=1 // pred_check
      _
    $region27: #{tpu_custom_call.1} parent=1 // pred_check_branch
      %1560 = sbr.rel (0) target = $region29
    $region28: #{tpu_custom_call.1} parent=1 // pred_region
      %1562 = vsyncadd [#allocation5], 0
      %s1563 = sshll.u32 [#allocation4], 4
      %s1564 = int_to_ptr.vmem [resolvable:$true] %s1563
      %s1565 = sshll.u32 %s6, 4
      %s1566 = int_to_ptr.hbm [resolvable:$true] %s1565
      %1571 = dma.vmem_to_hbm [thread:$0]  %s1564, 10240, %s1566, [#allocation5], 256, 256, 16
    $region29: #{tpu_custom_call.1} parent=1 // pred_fallthru
      _
    // Predicated region
    $region30: #{tpu_custom_call.1} parent=1 // pred_check
      _
    $region31: #{tpu_custom_call.1} parent=1 // pred_check_branch
      %1573 = sbr.rel (0) target = $region33
    $region32: #{tpu_custom_call.1} parent=1 // pred_region
      %1575 = dma.done [#allocation5], 10240
    $region33: #{tpu_custom_call.1} parent=1 // pred_fallthru
      _
    %1576 = vsyncpa [#allocation5], 1

</llo_original>
